<compile_context>
chip_gen: v6e
topology: v6e:2x2x1
jax: 0.10.0
libtpu: 0.0.40
codegen_flags: <defaults>
</compile_context>

<pallas_src>
import math

import jax
import jax.numpy as jnp
from jax.experimental import pallas as pl
from jax.experimental.pallas import tpu as pltpu

_LANE = 128
_SUBLANE = 8
# ~2 MiB per block -> 2 bufs x (in + out) = 8 MiB VMEM, fits v5e/v6e/v7x defaults.
_MAX_BLOCK_BYTES = 2 * 1024 * 1024
# Both tables go through one fused launch if their combined size is small.
_FUSE_BYTES_LIMIT = 4 * 1024 * 1024


# --------------------------------------------------------------------------- #
# Kernels
# --------------------------------------------------------------------------- #
def _fused_copy_kernel(u_ref, i_ref, u_out, i_out):
    # forward() is parameter lookup only: copy both tables in one launch.
    u_out[...] = u_ref[...]
    i_out[...] = i_ref[...]


def _copy_kernel(x_ref, o_ref):
    o_ref[...] = x_ref[...]


# --------------------------------------------------------------------------- #
# Wrappers
# --------------------------------------------------------------------------- #
def _lane_dense_view(x: jax.Array) -> jax.Array:
    """Reshape (rows, emb) -> (rows*emb/128, 128) when possible (free, row-major)."""
    rows, emb = x.shape
    total = rows * emb
    if total % _LANE == 0:
        return x.reshape(total // _LANE, _LANE)
    return x  # fallback: keep original layout (block last dim == full dim is legal)


def _fused_copy(u: jax.Array, i: jax.Array):
    """Single-launch copy of both (small) tables, outputs aliased to inputs."""
    return pl.pallas_call(
        _fused_copy_kernel,
        out_shape=(
            jax.ShapeDtypeStruct(u.shape, u.dtype),
            jax.ShapeDtypeStruct(i.shape, i.dtype),
        ),
        grid=(1,),
        in_specs=[
            pl.BlockSpec(u.shape, lambda k: (0, 0)),
            pl.BlockSpec(i.shape, lambda k: (0, 0)),
        ],
        out_specs=(
            pl.BlockSpec(u.shape, lambda k: (0, 0)),
            pl.BlockSpec(i.shape, lambda k: (0, 0)),
        ),
        input_output_aliases={0: 0, 1: 1},
        compiler_params=pltpu.CompilerParams(dimension_semantics=("arbitrary",)),
    )(u, i)


def _tiled_copy(x: jax.Array) -> jax.Array:
    """Streaming copy of one (large) table with big lane-dense row blocks."""
    rows, cols = x.shape
    bytes_per_row = cols * x.dtype.itemsize
    block_rows = max(_SUBLANE, (_MAX_BLOCK_BYTES // max(bytes_per_row, 1))
                     // _SUBLANE * _SUBLANE)
    if block_rows >= rows:
        block_rows = rows  # full-extent block is always layout-legal
    grid = (pl.cdiv(rows, block_rows),)
    return pl.pallas_call(
        _copy_kernel,
        out_shape=jax.ShapeDtypeStruct((rows, cols), x.dtype),
        grid=grid,
        in_specs=[pl.BlockSpec((block_rows, cols), lambda i: (i, 0))],
        out_specs=pl.BlockSpec((block_rows, cols), lambda i: (i, 0)),
        compiler_params=pltpu.CompilerParams(dimension_semantics=("parallel",)),
    )(x)


def mf_forward(user_emb: jax.Array, item_emb: jax.Array):
    """Pallas equivalent of Matrix_Factorization.forward()."""
    u2 = _lane_dense_view(user_emb)
    i2 = _lane_dense_view(item_emb)
    total_bytes = (user_emb.size * user_emb.dtype.itemsize
                   + item_emb.size * item_emb.dtype.itemsize)
    if total_bytes <= _FUSE_BYTES_LIMIT:
        u_out, i_out = _fused_copy(u2, i2)
    else:
        u_out, i_out = _tiled_copy(u2), _tiled_copy(i2)
    return u_out.reshape(user_emb.shape), i_out.reshape(item_emb.shape)


# --------------------------------------------------------------------------- #
# Module port
# --------------------------------------------------------------------------- #
def xavier_uniform(key, shape, dtype=jnp.float32):
    """Deterministic equivalent of nn.init.xavier_uniform_ for a 2-D tensor."""
    fan_out, fan_in = shape[0], shape[1]  # torch: fan_in = size(1), fan_out = size(0)
    bound = math.sqrt(6.0 / (fan_in + fan_out))
    return jax.random.uniform(key, shape, dtype=dtype, minval=-bound, maxval=bound)


class MatrixFactorizationPallas:
    """JAX/Pallas port of Matrix_Factorization."""

    def __init__(self, user_num: int, item_num: int, emb_size: int, key):
        ku, ki = jax.random.split(key)
        self.user_emb = xavier_uniform(ku, (user_num, emb_size))
        self.item_emb = xavier_uniform(ki, (item_num, emb_size))

    def forward(self):
        # Same semantics as the PyTorch module: return (user_emb, item_emb).
        return mf_forward(self.user_emb, self.item_emb)


if __name__ == "__main__":
    key = jax.random.PRNGKey(0)
    user_num, item_num, emb_size = 64, 48, 32  # small synthetic "data" stats

    model = MatrixFactorizationPallas(user_num, item_num, emb_size, key)
    user_out, item_out = model.forward()
    jax.block_until_ready((user_out, item_out))

    # Correctness: forward is an identity on the parameter tables.
    assert user_out.shape == (user_num, emb_size)
    assert item_out.shape == (item_num, emb_size)
    assert user_out.dtype == model.user_emb.dtype
    assert item_out.dtype == model.item_emb.dtype
    assert jnp.allclose(user_out, model.user_emb)
    assert jnp.allclose(item_out, model.item_emb)

    # Also exercise the large-table tiled path once (cdiv handles ragged rows).
    big = xavier_uniform(jax.random.PRNGKey(1), (8200, 32))
    big_out = _tiled_copy(_lane_dense_view(big)).reshape(big.shape)
    jax.block_until_ready(big_out)
    assert jnp.allclose(big_out, big)

    print("KERNEL_OK")
</pallas_src>

<mosaic_0001>
module attributes {stable_mosaic.version = 11 : i64} {
  func.func @_fused_copy_kernel(%arg0: i32, %arg1: memref<16x128xf32, #tpu.memory_space<vmem>>, %arg2: memref<12x128xf32, #tpu.memory_space<vmem>>, %arg3: memref<16x128xf32, #tpu.memory_space<vmem>>, %arg4: memref<12x128xf32, #tpu.memory_space<vmem>>) attributes {dimension_semantics = [#tpu.dimension_semantics<arbitrary>], iteration_bounds = array<i64: 1>, scalar_prefetch = 0 : i64, scratch_operands = 0 : i64, tpu.core_type = #tpu.core_type<tc>, window_params = [{pipeline_mode = #tpu.pipeline_mode<synchronous>, transform_indices = @transform_0, window_bounds = array<i64: 16, 128>}, {pipeline_mode = #tpu.pipeline_mode<synchronous>, transform_indices = @transform_1, window_bounds = array<i64: 12, 128>}, {pipeline_mode = #tpu.pipeline_mode<synchronous>, transform_indices = @transform_2, window_bounds = array<i64: 16, 128>}, {pipeline_mode = #tpu.pipeline_mode<synchronous>, transform_indices = @transform_3, window_bounds = array<i64: 12, 128>}]} {
    %c0 = arith.constant 0 : index
    %c0_0 = arith.constant 0 : index
    %0 = vector.load %arg1[%c0, %c0_0] : memref<16x128xf32, #tpu.memory_space<vmem>>, vector<16x128xf32>
    %c0_1 = arith.constant 0 : index
    %c0_2 = arith.constant 0 : index
    %1 = vector.load %arg3[%c0_1, %c0_2] : memref<16x128xf32, #tpu.memory_space<vmem>>, vector<16x128xf32>
    tpu.vector_store %arg3[%c0_1, %c0_2], %0 {strides = array<i32>} : memref<16x128xf32, #tpu.memory_space<vmem>>, vector<16x128xf32>,
    %c0_3 = arith.constant 0 : index
    %c0_4 = arith.constant 0 : index
    %2 = vector.load %arg2[%c0_3, %c0_4] : memref<12x128xf32, #tpu.memory_space<vmem>>, vector<12x128xf32>
    %c0_5 = arith.constant 0 : index
    %c0_6 = arith.constant 0 : index
    %3 = vector.load %arg4[%c0_5, %c0_6] : memref<12x128xf32, #tpu.memory_space<vmem>>, vector<12x128xf32>
    tpu.vector_store %arg4[%c0_5, %c0_6], %2 {strides = array<i32>} : memref<12x128xf32, #tpu.memory_space<vmem>>, vector<12x128xf32>,
    return
  }
  func.func @transform_0(%arg0: i32) -> (i32, i32) {
    %c0_i32 = arith.constant 0 : i32
    %c0_i32_0 = arith.constant 0 : i32
    %c0_i32_1 = arith.constant 0 : i32
    return %c0_i32, %c0_i32_0 : i32, i32
  }
  func.func @transform_1(%arg0: i32) -> (i32, i32) {
    %c0_i32 = arith.constant 0 : i32
    %c0_i32_0 = arith.constant 0 : i32
    %c0_i32_1 = arith.constant 0 : i32
    return %c0_i32, %c0_i32_0 : i32, i32
  }
  func.func @transform_2(%arg0: i32) -> (i32, i32) {
    %c0_i32 = arith.constant 0 : i32
    %c0_i32_0 = arith.constant 0 : i32
    %c0_i32_1 = arith.constant 0 : i32
    return %c0_i32, %c0_i32_0 : i32, i32
  }
  func.func @transform_3(%arg0: i32) -> (i32, i32) {
    %c0_i32 = arith.constant 0 : i32
    %c0_i32_0 = arith.constant 0 : i32
    %c0_i32_1 = arith.constant 0 : i32
    return %c0_i32, %c0_i32_0 : i32, i32
  }
}

</mosaic_0001>

<llo_original>
// kernel: tpu_custom_call.1
$region0: #{tpu_custom_call.1}
  #allocation0 [shape = 'u32[]', space=smem, size = 0x4, offset = 0x4, fixed_abs, tag = 'smem constant byte address 0x4 - core index']
  #allocation1 [shape = 'u32[144,128]{1,0:T(1,128)}', space=vmem, size = 0x12000, scoped, tag = 'internal scratch']
  %s0 = inlined_call_operand.hbm [shape: f32[16,128], index: 0, kind: input, shape index: {}, may-alias: {0,2}]
  %s1 = inlined_call_operand.hbm [shape: f32[12,128], index: 1, kind: input, shape index: {}, may-alias: {1,3}]
  %s2 = inlined_call_operand.hbm [shape: f32[16,128], index: 2, kind: output, shape index: {0}, may-alias: {0,2}]
  %s3 = inlined_call_operand.hbm [shape: f32[12,128], index: 3, kind: output, shape index: {1}, may-alias: {1,3}]
  %4 = xla_tuple %s2, %s3
  %s5 = sld [smem:[#allocation0]]
  $region34: #{tpu_custom_call.1} parent=0
    _
  %s7 = ssub.s32 1, %s5
  %s8 = scalar_select 0, %s7, %s5
  $region1: #{tpu_custom_call.1} parent=0
    #allocation2 [shape = 'u8[8192]{0}', space=vmem, size = 0x2000, scoped, tag = 'input window, operand 0, single buffered']
    #allocation3 [shape = 's32[1]{0}', space=sflag, size = 0x4, scoped, tag = 'scoped memory for tpu_custom_call.1']
    #allocation4 [shape = 's32[1]{0}', space=sflag, size = 0x4, scoped, tag = 'scoped memory for tpu_custom_call.1']
    #allocation5 [shape = 'u8[8192]{0}', space=vmem, size = 0x2000, scoped, tag = 'input window, operand 1, single buffered']
    #allocation6 [shape = 's32[1]{0}', space=sflag, size = 0x4, scoped, tag = 'scoped memory for tpu_custom_call.1']
    #allocation7 [shape = 'u8[8192]{0}', space=vmem, size = 0x2000, scoped, tag = 'output window, operand 0, single buffered']
    #allocation8 [shape = 'u8[8192]{0}', space=vmem, size = 0x2000, scoped, tag = 'output window, operand 1, single buffered']
    #allocation9 [shape = 's32[1]{0}', space=sflag, size = 0x4, scoped, tag = 'scoped memory for tpu_custom_call.1']
    %9 = vsyncpa [#allocation3], 0
    %10 = vsyncpa [#allocation6], 0
    %11 = vsyncpa [#allocation4], 0
    %12 = vsyncpa [#allocation9], 0
    // Predicated region
    $region2: #{tpu_custom_call.1} parent=1 // pred_check
      _
    $region3: #{tpu_custom_call.1} parent=1 // pred_check_branch
      %14 = sbr.rel (0) target = $region5
    $region4: #{tpu_custom_call.1} parent=1 // pred_region
      %s16 = ssub.s32 256, 256
      %17 = vsyncadd [#allocation3], %s16
      %s18 = sshll.u32 [#allocation2], 4
      %s19 = int_to_ptr.vmem [resolvable:$true] %s18
      %24 = dma.hbm_to_vmem [thread:$0]  %s0, 256, %s19, [#allocation3], 128, 128, 8
    $region5: #{tpu_custom_call.1} parent=1 // pred_fallthru
      _
    // Predicated region
    $region6: #{tpu_custom_call.1} parent=1 // pred_check
      _
    $region7: #{tpu_custom_call.1} parent=1 // pred_check_branch
      %26 = sbr.rel (0) target = $region9
    $region8: #{tpu_custom_call.1} parent=1 // pred_region
      %s28 = ssub.s32 256, 256
      %29 = vsyncadd [#allocation6], %s28
      %s30 = sshll.u32 [#allocation5], 4
      %s31 = int_to_ptr.vmem [resolvable:$true] %s30
      %36 = dma.hbm_to_vmem [thread:$0]  %s1, 256, %s31, [#allocation6], 128, 128, 8
    $region9: #{tpu_custom_call.1} parent=1 // pred_fallthru
      _
    // Predicated region
    $region10: #{tpu_custom_call.1} parent=1 // pred_check
      _
    $region11: #{tpu_custom_call.1} parent=1 // pred_check_branch
      %38 = sbr.rel (0) target = $region13
    $region12: #{tpu_custom_call.1} parent=1 // pred_region
      %39 = dma.done [#allocation3], 256
    $region13: #{tpu_custom_call.1} parent=1 // pred_fallthru
      _
    // Predicated region
    $region14: #{tpu_custom_call.1} parent=1 // pred_check
      _
    $region15: #{tpu_custom_call.1} parent=1 // pred_check_branch
      %41 = sbr.rel (0) target = $region17
    $region16: #{tpu_custom_call.1} parent=1 // pred_region
      %42 = dma.done [#allocation6], 256
    $region17: #{tpu_custom_call.1} parent=1 // pred_fallthru
      _
    %v43 = vld [vmem:[#allocation2] sm:$0xff]
    %v44 = vld [vmem:[#allocation2 + $0x8] sm:$0xff]
    %45 = vst [vmem:[#allocation7] sm:$0xff] %v43
    %46 = vst [vmem:[#allocation7 + $0x8] sm:$0xff] %v44
    %v47 = vld [vmem:[#allocation5] sm:$0xff]
    %v48 = vld [vmem:[#allocation5 + $0x8] sm:$0xf]
    %49 = vst [vmem:[#allocation8] sm:$0xff] %v47
    %50 = vst [vmem:[#allocation8 + $0x8] sm:$0xf] %v48
    // Predicated region
    $region18: #{tpu_custom_call.1} parent=1 // pred_check
      _
    $region19: #{tpu_custom_call.1} parent=1 // pred_check_branch
      %52 = sbr.rel (0) target = $region21
    $region20: #{tpu_custom_call.1} parent=1 // pred_region
      %s54 = ssub.s32 256, 256
      %55 = vsyncadd [#allocation4], %s54
      %s56 = sshll.u32 [#allocation7], 4
      %s57 = int_to_ptr.vmem [resolvable:$true] %s56
      %62 = dma.vmem_to_hbm [thread:$0]  %s57, 256, %s2, [#allocation4], 128, 128, 8
    $region21: #{tpu_custom_call.1} parent=1 // pred_fallthru
      _
    // Predicated region
    $region22: #{tpu_custom_call.1} parent=1 // pred_check
      _
    $region23: #{tpu_custom_call.1} parent=1 // pred_check_branch
      %64 = sbr.rel (0) target = $region25
    $region24: #{tpu_custom_call.1} parent=1 // pred_region
      %s66 = ssub.s32 256, 256
      %67 = vsyncadd [#allocation9], %s66
      %s68 = sshll.u32 [#allocation8], 4
      %s69 = int_to_ptr.vmem [resolvable:$true] %s68
      %74 = dma.vmem_to_hbm [thread:$0]  %s69, 256, %s3, [#allocation9], 128, 128, 8
    $region25: #{tpu_custom_call.1} parent=1 // pred_fallthru
      _
    // Predicated region
    $region26: #{tpu_custom_call.1} parent=1 // pred_check
      _
    $region27: #{tpu_custom_call.1} parent=1 // pred_check_branch
      %76 = sbr.rel (0) target = $region29
    $region28: #{tpu_custom_call.1} parent=1 // pred_region
      %77 = dma.done [#allocation4], 256
    $region29: #{tpu_custom_call.1} parent=1 // pred_fallthru
      _
    // Predicated region
    $region30: #{tpu_custom_call.1} parent=1 // pred_check
      _
    $region31: #{tpu_custom_call.1} parent=1 // pred_check_branch
      %79 = sbr.rel (0) target = $region33
    $region32: #{tpu_custom_call.1} parent=1 // pred_region
      %80 = dma.done [#allocation9], 256
    $region33: #{tpu_custom_call.1} parent=1 // pred_fallthru
      _
    %81 = vsyncpa [#allocation3], 1
    %82 = vsyncpa [#allocation6], 1
    %83 = vsyncpa [#allocation4], 1
    %84 = vsyncpa [#allocation9], 1

</llo_original>
